<compile_context>
chip_gen: v6e
topology: v6e:2x2x1
jax: 0.10.0
libtpu: 0.0.40
codegen_flags: <defaults>
</compile_context>

<pallas_src>
import functools

import jax
import jax.numpy as jnp
from jax.experimental import pallas as pl
from jax.experimental.pallas import tpu as pltpu

_LANE = 128
_SUBLANE = 8
_BATCH_TILE_MAX = 1024   # TODO(synk): make per-generation (v7x VMEM is smaller)
_SINGLE_SHOT_MAX = 128   # above this B, use >=2 batch tiles (megacore on v7x)
_FALLBACK_TM = 512
_FALLBACK_TN = 256
_NEG_SLOPE = 0.01


def _cdiv(a, b):
    return -(-a // b)


def _round_up(n, m):
    return ((n + m - 1) // m) * m


# ---------------------------------------------------------------------------
# Fully fused MLP kernel: all weights VMEM-resident, intermediates in vregs.
# ---------------------------------------------------------------------------
def _mlp_fused_kernel(*refs, n_layers, negative_slope):
    """refs = (x, w1, b1, ..., wN, bN, out). Weights bf16, everything else f32."""
    x_ref = refs[0]
    o_ref = refs[-1]
    wb = refs[1:-1]
    h = x_ref[...]                                       # f32 [rows, in_dim]
    for l in range(n_layers):
        w = wb[2 * l][...]                               # bf16 [in_w, out_w]
        b = wb[2 * l + 1][...]                           # f32  [1, out_w]
        # bf16 MXU matmul with f32 accumulate; bias + LeakyReLU stay in f32.
        h = jnp.dot(h.astype(w.dtype), w, preferred_element_type=jnp.float32) + b
        if l != n_layers - 1:
            h = jnp.where(h >= 0, h, negative_slope * h)
    o_ref[...] = h.astype(o_ref.dtype)


# ---------------------------------------------------------------------------
# Per-layer weight-streaming fallback (used when weights do not fit in VMEM).
# ---------------------------------------------------------------------------
def _linear_kernel(x_ref, w_ref, b_ref, o_ref, *, apply_act, negative_slope):
    h = jnp.dot(x_ref[...].astype(w_ref.dtype), w_ref[...],
                preferred_element_type=jnp.float32) + b_ref[...]
    if apply_act:
        h = jnp.where(h >= 0, h, negative_slope * h)
    o_ref[...] = h.astype(o_ref.dtype)


def _linear_pallas(x, w_t, b, *, apply_act, negative_slope, vmem_limit=None):
    """One Linear (+ optional LeakyReLU), tiled over batch and N; K kept whole."""
    M, K = x.shape
    N = int(w_t.shape[1])
    # Either equal to the full array dim (legal) or a multiple of 8 / 128 (legal).
    tm = min(_FALLBACK_TM, M)
    tn = min(_FALLBACK_TN, N)
    grid = (_cdiv(M, tm), _cdiv(N, tn))
    kernel = functools.partial(_linear_kernel, apply_act=apply_act,
                               negative_slope=negative_slope)
    cost = pl.CostEstimate(
        flops=int(2 * M * K * N), transcendentals=0,
        bytes_accessed=int(M * K * 4 + int(w_t.size) * w_t.dtype.itemsize
                           + int(b.size) * 4 + M * N * 4))
    cparams = dict(dimension_semantics=("parallel", "parallel"))
    if vmem_limit is not None:
        cparams["vmem_limit_bytes"] = int(vmem_limit)
    return pl.pallas_call(
        kernel,
        out_shape=jax.ShapeDtypeStruct((M, N), jnp.float32),
        grid=grid,
        in_specs=[pl.BlockSpec((tm, K), lambda i, j: (i, 0)),
                  pl.BlockSpec((K, tn), lambda i, j: (0, j)),
                  pl.BlockSpec((1, tn), lambda i, j: (0, j))],
        out_specs=pl.BlockSpec((tm, tn), lambda i, j: (i, j)),
        compiler_params=pltpu.CompilerParams(**cparams),
        cost_estimate=cost,
    )(x, w_t, b)


class ModelPallas:
    """JAX/Pallas equivalent of the PyTorch MLP Model (noDrop inference path)."""

    def __init__(self, layers_size: str, drop_p: str, key):
        self.layers_size = [int(s) for s in layers_size.split(",")]
        self.drop_p = [float(p) for p in drop_p.split(",")]   # unused at inference
        self.negative_slope = _NEG_SLOPE
        n_linear = len(self.layers_size) - 1
        self.n_linear = n_linear

        keys = jax.random.split(key, n_linear * 2)
        self.params = []    # PyTorch-convention ([out,in] f32 weight, [out] f32 bias)
        self._packed = []   # kernel-ready: ([in_w, out_w] bf16 w^T, [1, out_w] f32 b)
        for l in range(n_linear):
            fan_in = self.layers_size[l]
            fan_out = self.layers_size[l + 1]
            bound = 1.0 / (fan_in ** 0.5)
            w = jax.random.uniform(keys[2 * l], (fan_out, fan_in), jnp.float32,
                                   -bound, bound)
            b = jax.random.uniform(keys[2 * l + 1], (fan_out,), jnp.float32,
                                   -bound, bound)
            self.params.append((w, b))

            # Hoisted packing: transpose + bf16 cast.  Only *hidden* widths are
            # zero-padded to 128 lanes (lane-dense intermediates); the first input
            # dim and the final output dim stay unpadded so no wrapper pad/slice.
            in_w = fan_in if l == 0 else _round_up(fan_in, _LANE)
            out_w = fan_out if l == n_linear - 1 else _round_up(fan_out, _LANE)
            w_t = (jnp.zeros((in_w, out_w), jnp.bfloat16)
                   .at[:fan_in, :fan_out].set(w.T.astype(jnp.bfloat16)))
            b_p = jnp.zeros((1, out_w), jnp.float32).at[0, :fan_out].set(b)
            self._packed.append((w_t, b_p))

        self._flat_wb = [a for wb in self._packed for a in wb]
        self._weight_bytes = sum(int(a.size) * a.dtype.itemsize
                                 for a in self._flat_wb)
        self._max_width = max([self.layers_size[0]]
                              + [int(w.shape[1]) for w, _ in self._packed])

        # VMEM budget guard (v7x: 64 MiB physical per TC; v5e/v6e: 128 MiB).
        try:
            vmem_cap = int(pltpu.get_tpu_info().vmem_capacity_bytes)
        except Exception:
            vmem_cap = 64 << 20
        self._vmem_budget = int(0.70 * vmem_cap)                 # fused path must fit
        self._vmem_limit = int(min(max(0.85 * vmem_cap, 32 << 20), 100 << 20))

    # -- helpers ------------------------------------------------------------
    def _cost_estimate(self, rows):
        flops = 2 * rows * sum(self.layers_size[l] * self.layers_size[l + 1]
                               for l in range(self.n_linear))
        bytes_accessed = (rows * (self.layers_size[0] + self.layers_size[-1]) * 4
                          + self._weight_bytes)
        return pl.CostEstimate(flops=int(flops), transcendentals=0,
                               bytes_accessed=int(bytes_accessed))

    def _fused_vmem_estimate(self, rows, io_buffers):
        io = io_buffers * rows * (self.layers_size[0] + self.layers_size[-1]) * 4
        act = 3 * rows * self._max_width * 4   # live f32 intermediate + bf16 copy
        return self._weight_bytes + io + act

    def _forward_streaming(self, x):
        """Per-layer weight-streaming fallback (weights too big to keep resident)."""
        h = x
        for l, (w_t, b_p) in enumerate(self._packed):
            h = _linear_pallas(h, w_t, b_p,
                               apply_act=(l != self.n_linear - 1),
                               negative_slope=self.negative_slope,
                               vmem_limit=self._vmem_limit)
        return h

    # -- forward ------------------------------------------------------------
    def __call__(self, x, force_streaming=False):
        B, in_dim = x.shape
        assert in_dim == self.layers_size[0]
        out_dim = self.layers_size[-1]

        if B <= _SINGLE_SHOT_MAX:
            tile, gridded = B, False
        else:
            # >= 2 tiles so the "parallel" batch axis shards across v7x's 2 TCs.
            tile = min(_BATCH_TILE_MAX, _round_up(_cdiv(B, 2), _SUBLANE))
            gridded = True

        fits = (self._fused_vmem_estimate(tile, 2 if gridded else 1)
                <= self._vmem_budget)
        if force_streaming or not fits:
            # TODO(synk): an emit_pipeline fused weight-streaming variant would beat
            # this per-layer fallback for giant layers.
            return self._forward_streaming(x)

        kernel = functools.partial(_mlp_fused_kernel, n_layers=self.n_linear,
                                   negative_slope=self.negative_slope)

        if not gridded:
            # Tiny batch: single invocation, everything full-block in VMEM.
            vm = pl.BlockSpec(memory_space=pltpu.MemorySpace.VMEM)
            return pl.pallas_call(
                kernel,
                out_shape=jax.ShapeDtypeStruct((B, out_dim), jnp.float32),
                in_specs=[vm] * (1 + len(self._flat_wb)),
                out_specs=vm,
                compiler_params=pltpu.CompilerParams(
                    vmem_limit_bytes=self._vmem_limit),
                cost_estimate=self._cost_estimate(B),
            )(x, *self._flat_wb)

        # Gridded batch: x / out batch-tiled (double-buffered, masked partial last
        # tile); weights/biases whole-array VMEM residents (single buffer, fetched
        # once) instead of default double-buffered constant-index blocks.
        grid = (_cdiv(B, tile),)
        wspec = pl.BlockSpec(memory_space=pltpu.MemorySpace.VMEM)
        in_specs = ([pl.BlockSpec((tile, in_dim), lambda i: (i, 0))]
                    + [wspec] * len(self._flat_wb))
        out_specs = pl.BlockSpec((tile, out_dim), lambda i: (i, 0))
        return pl.pallas_call(
            kernel,
            out_shape=jax.ShapeDtypeStruct((B, out_dim), jnp.float32),
            grid=grid,
            in_specs=in_specs,
            out_specs=out_specs,
            compiler_params=pltpu.CompilerParams(
                dimension_semantics=("parallel",),
                vmem_limit_bytes=self._vmem_limit),
            cost_estimate=self._cost_estimate(B),
        )(x, *self._flat_wb)


if __name__ == "__main__":
    key = jax.random.PRNGKey(0)
    k_model, k_x1, k_x2 = jax.random.split(key, 3)

    layers_size = "32,64,48,16"   # in -> hidden -> hidden -> out
    drop_p = "0.1,0.1,0.1"
    model = ModelPallas(layers_size, drop_p, k_model)

    def ref_f32(x, params, slope=0.01):
        h = x
        for l, (w, b) in enumerate(params):
            h = h @ w.T + b
            if l != len(params) - 1:
                h = jnp.where(h >= 0, h, slope * h)
        return h

    def ref_bf16(x, params, slope=0.01):
        # Emulates kernel precision: bf16 matmul operands, f32 accum / elementwise.
        h = x
        for l, (w, b) in enumerate(params):
            h = jnp.dot(h.astype(jnp.bfloat16), w.T.astype(jnp.bfloat16),
                        preferred_element_type=jnp.float32) + b
            if l != len(params) - 1:
                h = jnp.where(h >= 0, h, slope * h)
        return h

    # 1) small batch -> single-shot fused path
    x1 = jax.random.normal(k_x1, (8, 32), jnp.float32)
    y1 = model(x1)
    jax.block_until_ready(y1)
    assert y1.shape == (8, 16)
    assert jnp.allclose(y1, ref_bf16(x1, model.params), atol=2e-3, rtol=2e-3)
    assert jnp.allclose(y1, ref_f32(x1, model.params), atol=5e-2, rtol=5e-2)

    # 2) larger batch -> gridded fused path (2 tiles, masked partial last tile)
    x2 = jax.random.normal(k_x2, (300, 32), jnp.float32)
    y2 = model(x2)
    jax.block_until_ready(y2)
    assert y2.shape == (300, 16)
    assert jnp.allclose(y2, ref_bf16(x2, model.params), atol=2e-3, rtol=2e-3)

    # 3) per-layer weight-streaming fallback path (VMEM-guard route)
    y3 = model(x2, force_streaming=True)
    jax.block_until_ready(y3)
    assert jnp.allclose(y3, y2, atol=1e-4, rtol=1e-4)

    print("KERNEL_OK")
</pallas_src>

<mosaic_0001>
module attributes {stable_mosaic.version = 11 : i64} {
  func.func @_mlp_fused_kernel(%arg0: memref<8x32xf32, #tpu.memory_space<vmem>>, %arg1: memref<32x128xbf16, #tpu.memory_space<vmem>>, %arg2: memref<1x128xf32, #tpu.memory_space<vmem>>, %arg3: memref<128x128xbf16, #tpu.memory_space<vmem>>, %arg4: memref<1x128xf32, #tpu.memory_space<vmem>>, %arg5: memref<128x16xbf16, #tpu.memory_space<vmem>>, %arg6: memref<1x16xf32, #tpu.memory_space<vmem>>, %arg7: memref<8x16xf32, #tpu.memory_space<vmem>>) attributes {dimension_semantics = [], scalar_prefetch = 0 : i64, scratch_operands = 0 : i64, tpu.core_type = #tpu.core_type<tc>} {
    %c0 = arith.constant 0 : index
    %c0_0 = arith.constant 0 : index
    %0 = vector.load %arg0[%c0, %c0_0] : memref<8x32xf32, #tpu.memory_space<vmem>>, vector<8x32xf32>
    %c0_1 = arith.constant 0 : index
    %c0_2 = arith.constant 0 : index
    %1 = vector.load %arg1[%c0_1, %c0_2] : memref<32x128xbf16, #tpu.memory_space<vmem>>, vector<32x128xbf16>
    %c0_3 = arith.constant 0 : index
    %c0_4 = arith.constant 0 : index
    %2 = vector.load %arg2[%c0_3, %c0_4] : memref<1x128xf32, #tpu.memory_space<vmem>>, vector<1x128xf32>
    %3 = arith.truncf %0 : vector<8x32xf32> to vector<8x32xbf16>
    %cst = arith.constant dense<0.000000e+00> : vector<8x128xf32>
    %4 = tpu.matmul %3, %1, %cst {dimension_numbers = #tpu.dot_dimension_numbers<[1], [0], [0], [1], [0, 0, 1, 1], [], []>} : vector<8x32xbf16>, vector<32x128xbf16>, vector<8x128xf32> -> vector<8x128xf32>
    %5 = vector.broadcast %2 : vector<1x128xf32> to vector<8x128xf32>
    %6 = arith.addf %4, %5 : vector<8x128xf32>
    %cst_5 = arith.constant 0.000000e+00 : f32
    %7 = vector.broadcast %cst_5 : f32 to vector<8x128xf32>
    %8 = arith.cmpf oge, %6, %7 : vector<8x128xf32>
    %cst_6 = arith.constant 0.00999999977 : f32
    %9 = vector.broadcast %cst_6 : f32 to vector<8x128xf32>
    %10 = arith.mulf %9, %6 : vector<8x128xf32>
    %11 = arith.select %8, %6, %10 : vector<8x128xi1>, vector<8x128xf32>
    %c0_7 = arith.constant 0 : index
    %c0_8 = arith.constant 0 : index
    %12 = vector.load %arg3[%c0_7, %c0_8] : memref<128x128xbf16, #tpu.memory_space<vmem>>, vector<128x128xbf16>
    %c0_9 = arith.constant 0 : index
    %c0_10 = arith.constant 0 : index
    %13 = vector.load %arg4[%c0_9, %c0_10] : memref<1x128xf32, #tpu.memory_space<vmem>>, vector<1x128xf32>
    %14 = arith.truncf %11 : vector<8x128xf32> to vector<8x128xbf16>
    %cst_11 = arith.constant dense<0.000000e+00> : vector<8x128xf32>
    %15 = tpu.matmul %14, %12, %cst_11 {dimension_numbers = #tpu.dot_dimension_numbers<[1], [0], [0], [1], [0, 0, 1, 1], [], []>} : vector<8x128xbf16>, vector<128x128xbf16>, vector<8x128xf32> -> vector<8x128xf32>
    %16 = vector.broadcast %13 : vector<1x128xf32> to vector<8x128xf32>
    %17 = arith.addf %15, %16 : vector<8x128xf32>
    %cst_12 = arith.constant 0.000000e+00 : f32
    %18 = vector.broadcast %cst_12 : f32 to vector<8x128xf32>
    %19 = arith.cmpf oge, %17, %18 : vector<8x128xf32>
    %cst_13 = arith.constant 0.00999999977 : f32
    %20 = vector.broadcast %cst_13 : f32 to vector<8x128xf32>
    %21 = arith.mulf %20, %17 : vector<8x128xf32>
    %22 = arith.select %19, %17, %21 : vector<8x128xi1>, vector<8x128xf32>
    %c0_14 = arith.constant 0 : index
    %c0_15 = arith.constant 0 : index
    %23 = vector.load %arg5[%c0_14, %c0_15] : memref<128x16xbf16, #tpu.memory_space<vmem>>, vector<128x16xbf16>
    %c0_16 = arith.constant 0 : index
    %c0_17 = arith.constant 0 : index
    %24 = vector.load %arg6[%c0_16, %c0_17] : memref<1x16xf32, #tpu.memory_space<vmem>>, vector<1x16xf32>
    %25 = arith.truncf %22 : vector<8x128xf32> to vector<8x128xbf16>
    %cst_18 = arith.constant dense<0.000000e+00> : vector<8x16xf32>
    %26 = tpu.matmul %25, %23, %cst_18 {dimension_numbers = #tpu.dot_dimension_numbers<[1], [0], [0], [1], [0, 0, 1, 1], [], []>} : vector<8x128xbf16>, vector<128x16xbf16>, vector<8x16xf32> -> vector<8x16xf32>
    %27 = vector.broadcast %24 : vector<1x16xf32> to vector<8x16xf32>
    %28 = arith.addf %26, %27 : vector<8x16xf32>
    %c0_19 = arith.constant 0 : index
    %c0_20 = arith.constant 0 : index
    %29 = vector.load %arg7[%c0_19, %c0_20] : memref<8x16xf32, #tpu.memory_space<vmem>>, vector<8x16xf32>
    tpu.vector_store %arg7[%c0_19, %c0_20], %28 {strides = array<i32>} : memref<8x16xf32, #tpu.memory_space<vmem>>, vector<8x16xf32>,
    return
  }
}

</mosaic_0001>

<llo_original>
// kernel: tpu_custom_call.1
$region0: #{tpu_custom_call.1}
  #allocation0 [shape = 'u32[]', space=smem, size = 0x4, offset = 0x4, fixed_abs, tag = 'smem constant byte address 0x4 - core index']
  #allocation1 [shape = 'u32[144,128]{1,0:T(1,128)}', space=vmem, size = 0x12000, scoped, tag = 'internal scratch']
  %s0 = inlined_call_operand.vmem [shape: f32[8,32], index: 0, kind: input, shape index: {}]
  %s1 = inlined_call_operand.hbm [shape: bf16[32,128], index: 1, kind: input, shape index: {}]
  %s2 = inlined_call_operand.vmem [shape: f32[1,128], index: 2, kind: input, shape index: {}]
  %s3 = inlined_call_operand.vmem [shape: bf16[128,128], index: 3, kind: input, shape index: {}]
  %s4 = inlined_call_operand.hbm [shape: f32[1,128], index: 4, kind: input, shape index: {}]
  %s5 = inlined_call_operand.vmem [shape: bf16[128,16], index: 5, kind: input, shape index: {}]
  %s6 = inlined_call_operand.vmem [shape: f32[1,16], index: 6, kind: input, shape index: {}]
  %s7 = inlined_call_operand.hbm [shape: f32[8,16], index: 7, kind: output, shape index: {}]
  %s8 = sld [smem:[#allocation0]]
  $region46: #{tpu_custom_call.1} parent=0
    _
  %s10 = ssub.s32 1, %s8
  %s11 = scalar_select 0, %s10, %s8
  $region1: #{tpu_custom_call.1} parent=0
    #allocation2 [shape = 'u8[8192]{0}', space=vmem, size = 0x2000, scoped, tag = 'input window, operand 1, single buffered']
    #allocation3 [shape = 's32[1]{0}', space=sflag, size = 0x4, scoped, tag = 'scoped memory for tpu_custom_call.1']
    #allocation4 [shape = 's32[1]{0}', space=sflag, size = 0x4, scoped, tag = 'scoped memory for tpu_custom_call.1']
    #allocation5 [shape = 'u8[512]{0}', space=vmem, size = 0x400, scoped, tag = 'input window, operand 4, single buffered']
    #allocation6 [shape = 's32[1]{0}', space=sflag, size = 0x4, scoped, tag = 'scoped memory for tpu_custom_call.1']
    #allocation7 [shape = 'u8[4096]{0}', space=vmem, size = 0x1000, scoped, tag = 'output window, operand 0, single buffered']
    %12 = vsyncpa [#allocation3], 0
    %13 = vsyncpa [#allocation6], 0
    %14 = vsyncpa [#allocation4], 0
    // Predicated region
    $region2: #{tpu_custom_call.1} parent=1 // pred_check
      _
    $region3: #{tpu_custom_call.1} parent=1 // pred_check_branch
      %16 = sbr.rel (0) target = $region5
    $region4: #{tpu_custom_call.1} parent=1 // pred_region
      _
    $region5: #{tpu_custom_call.1} parent=1 // pred_fallthru
      _
    // Predicated region
    $region6: #{tpu_custom_call.1} parent=1 // pred_check
      _
    $region7: #{tpu_custom_call.1} parent=1 // pred_check_branch
      %18 = sbr.rel (0) target = $region9
    $region8: #{tpu_custom_call.1} parent=1 // pred_region
      %s20 = ssub.s32 256, 256
      %21 = vsyncadd [#allocation3], %s20
      %s22 = sshll.u32 [#allocation2], 4
      %s23 = int_to_ptr.vmem [resolvable:$true] %s22
      %28 = dma.hbm_to_vmem [thread:$0]  %s1, 256, %s23, [#allocation3], 64, 64, 4
    $region9: #{tpu_custom_call.1} parent=1 // pred_fallthru
      _
    // Predicated region
    $region10: #{tpu_custom_call.1} parent=1 // pred_check
      _
    $region11: #{tpu_custom_call.1} parent=1 // pred_check_branch
      %30 = sbr.rel (0) target = $region13
    $region12: #{tpu_custom_call.1} parent=1 // pred_region
      _
    $region13: #{tpu_custom_call.1} parent=1 // pred_fallthru
      _
    // Predicated region
    $region14: #{tpu_custom_call.1} parent=1 // pred_check
      _
    $region15: #{tpu_custom_call.1} parent=1 // pred_check_branch
      %32 = sbr.rel (0) target = $region17
    $region16: #{tpu_custom_call.1} parent=1 // pred_region
      _
    $region17: #{tpu_custom_call.1} parent=1 // pred_fallthru
      _
    // Predicated region
    $region18: #{tpu_custom_call.1} parent=1 // pred_check
      _
    $region19: #{tpu_custom_call.1} parent=1 // pred_check_branch
      %34 = sbr.rel (0) target = $region21
    $region20: #{tpu_custom_call.1} parent=1 // pred_region
      %s36 = ssub.s32 16, 16
      %37 = vsyncadd [#allocation6], %s36
      %s39 = sshll.u32 [#allocation5], 4
      %s40 = int_to_ptr.vmem [resolvable:$true] %s39
      %42 = dma.hbm_to_vmem [thread:$0]  %s4, 16, %s40, [#allocation6]
    $region21: #{tpu_custom_call.1} parent=1 // pred_fallthru
      _
    // Predicated region
    $region22: #{tpu_custom_call.1} parent=1 // pred_check
      _
    $region23: #{tpu_custom_call.1} parent=1 // pred_check_branch
      %44 = sbr.rel (0) target = $region25
    $region24: #{tpu_custom_call.1} parent=1 // pred_region
      _
    $region25: #{tpu_custom_call.1} parent=1 // pred_fallthru
      _
    // Predicated region
    $region26: #{tpu_custom_call.1} parent=1 // pred_check
      _
    $region27: #{tpu_custom_call.1} parent=1 // pred_check_branch
      %46 = sbr.rel (0) target = $region29
    $region28: #{tpu_custom_call.1} parent=1 // pred_region
      _
    $region29: #{tpu_custom_call.1} parent=1 // pred_fallthru
      _
    // Predicated region
    $region30: #{tpu_custom_call.1} parent=1 // pred_check
      _
    $region31: #{tpu_custom_call.1} parent=1 // pred_check_branch
      %48 = sbr.rel (0) target = $region33
    $region32: #{tpu_custom_call.1} parent=1 // pred_region
      %49 = dma.done [#allocation3], 256
    $region33: #{tpu_custom_call.1} parent=1 // pred_fallthru
      _
    // Predicated region
    $region34: #{tpu_custom_call.1} parent=1 // pred_check
      _
    $region35: #{tpu_custom_call.1} parent=1 // pred_check_branch
      %51 = sbr.rel (0) target = $region37
    $region36: #{tpu_custom_call.1} parent=1 // pred_region
      %52 = dma.done [#allocation6], 16
    $region37: #{tpu_custom_call.1} parent=1 // pred_fallthru
      _
    %v54 = vld [vmem:[%s0] sm:$0xff]
    %v55 = vld [vmem:[#allocation2] sm:$0xf]
    %v56 = vld [vmem:[#allocation2 + $0x4] sm:$0xf]
    %v57 = vld [vmem:[#allocation2 + $0x8] sm:$0xf]
    %v58 = vld [vmem:[#allocation2 + $0xc] sm:$0xf]
    %v59 = vld [vmem:[%s2] sm:$0x1]
    %v60 = vpack.c.bf16 %v54, %v54
    %v62 = vlaneseq
    %v63 = vshrl.u32 %v62, 7
    %v64 = vsub.s32 0, %v63
    %v65 = vrot.slane %v59, %v64
    %v71 = vunpack.c.l.b16 %v55
    %v72 = vunpack.c.l.b16 %v56
    %v73 = vunpack.c.l.b16 %v57
    %v74 = vunpack.c.l.b16 %v58
    %v75 = vpack.c.b16 %v72, %v71
    %v76 = vpack.c.b16 %v74, %v73
    %vm79 = vcmask 261120
    %v81 = vsel %vm79, %v60, 0
    %83 = vmatprep.subr.bf16.mxu0 0
    %84 = vmatpush1.bf16.msra.mxu0 0
    %85 = vmatprep.subr.bf16.mxu0 0
    %86 = vmatpush1.bf16.msra.mxu0 0
    %87 = vmatprep.subr.bf16.mxu0 0
    %88 = vmatpush1.bf16.msra.mxu0 0
    %89 = vmatprep.subr.bf16.mxu0 0
    %90 = vmatpush1.bf16.msra.mxu0 0
    %91 = vmatprep.subr.bf16.mxu0 0
    %92 = vmatpush1.bf16.msra.mxu0 0
    %93 = vmatprep.subr.bf16.mxu0 0
    %94 = vmatpush1.bf16.msra.mxu0 0
    %95 = vmatprep.subr.bf16.mxu0 0
    %96 = vmatpush1.bf16.msra.mxu0 %v76
    %97 = vmatprep.subr.bf16.mxu0 0
    %98 = vmatpush1.bf16.msra.mxu0 %v75
    %99 = vmatprep.subr.bf16.mxu0 0
    %100 = vmatpush2.bf16.msra.mxu0 0
    %101 = vmatprep.subr.bf16.mxu0 0
    %102 = vmatpush2.bf16.msra.mxu0 0
    %103 = vmatprep.subr.bf16.mxu0 0
    %104 = vmatpush2.bf16.msra.mxu0 0
    %105 = vmatprep.subr.bf16.mxu0 0
    %106 = vmatpush2.bf16.msra.mxu0 0
    %107 = vmatprep.subr.bf16.mxu0 0
    %108 = vmatpush2.bf16.msra.mxu0 0
    %109 = vmatprep.subr.bf16.mxu0 0
    %110 = vmatpush2.bf16.msra.mxu0 0
    %111 = vmatprep.subr.bf16.mxu0 0
    %112 = vmatpush2.bf16.msra.mxu0 0
    %113 = vmatprep.subr.bf16.mxu0 0
    %114 = vmatpush2.bf16.msra.mxu0 0
    %115 = vmatprep.mubr.bf16.mxu0 0
    %116 = vmatmul.mubr.bf16.gmra.mxu0 %v81
    %v117 = vpop.f32.mrf.mxu0
    %v118 = vadd.f32 %v65, %v117
    %v119 = vpop.f32.mrf.mxu0
    %v120 = vpop.f32.mrf.mxu0
    %v121 = vpop.f32.mrf.mxu0
    %122 = vdwg.mxu0
    %vm123 = vcmp.ge.f32.partialorder %v118, 0.0
    %v124 = vmul.f32 %v118, 0.01
    %v125 = vsel %vm123, %v118, %v124
    %v126 = vld [vmem:[%s3] sm:$0xf]
    %v127 = vld [vmem:[%s3 + $0x4] sm:$0xf]
    %v128 = vld [vmem:[%s3 + $0x8] sm:$0xf]
    %v129 = vld [vmem:[%s3 + $0xc] sm:$0xf]
    %v130 = vld [vmem:[%s3 + $0x10] sm:$0xf]
    %v131 = vld [vmem:[%s3 + $0x14] sm:$0xf]
    %v132 = vld [vmem:[%s3 + $0x18] sm:$0xf]
    %v133 = vld [vmem:[%s3 + $0x1c] sm:$0xf]
    %v134 = vld [vmem:[%s3 + $0x20] sm:$0xf]
    %v135 = vld [vmem:[%s3 + $0x24] sm:$0xf]
    %v136 = vld [vmem:[%s3 + $0x28] sm:$0xf]
    %v137 = vld [vmem:[%s3 + $0x2c] sm:$0xf]
    %v138 = vld [vmem:[%s3 + $0x30] sm:$0xf]
    %v139 = vld [vmem:[%s3 + $0x34] sm:$0xf]
    %v140 = vld [vmem:[%s3 + $0x38] sm:$0xf]
    %v141 = vld [vmem:[%s3 + $0x3c] sm:$0xf]
    %v142 = vld [vmem:[#allocation5] sm:$0x1]
    %v143 = vpack.c.bf16 %v125, %v125
    %v145 = vlaneseq
    %v146 = vshrl.u32 %v145, 7
    %v147 = vsub.s32 0, %v146
    %v148 = vrot.slane %v142, %v147
    %v166 = vunpack.c.l.b16 %v126
    %v167 = vunpack.c.l.b16 %v127
    %v168 = vunpack.c.l.b16 %v128
    %v169 = vunpack.c.l.b16 %v129
    %v170 = vunpack.c.l.b16 %v130
    %v171 = vunpack.c.l.b16 %v131
    %v172 = vunpack.c.l.b16 %v132
    %v173 = vunpack.c.l.b16 %v133
    %v174 = vunpack.c.l.b16 %v134
    %v175 = vunpack.c.l.b16 %v135
    %v176 = vunpack.c.l.b16 %v136
    %v177 = vunpack.c.l.b16 %v137
    %v178 = vunpack.c.l.b16 %v138
    %v179 = vunpack.c.l.b16 %v139
    %v180 = vunpack.c.l.b16 %v140
    %v181 = vunpack.c.l.b16 %v141
    %v182 = vpack.c.b16 %v167, %v166
    %v183 = vpack.c.b16 %v169, %v168
    %v184 = vpack.c.b16 %v171, %v170
    %v185 = vpack.c.b16 %v173, %v172
    %v186 = vpack.c.b16 %v175, %v174
    %v187 = vpack.c.b16 %v177, %v176
    %v188 = vpack.c.b16 %v179, %v178
    %v189 = vpack.c.b16 %v181, %v180
    %198 = vmatprep.subr.bf16.mxu0 0
    %199 = vmatpush1.bf16.msra.mxu0 %v189
    %200 = vmatprep.subr.bf16.mxu0 0
    %201 = vmatpush1.bf16.msra.mxu0 %v188
    %202 = vmatprep.subr.bf16.mxu0 0
    %203 = vmatpush1.bf16.msra.mxu0 %v187
    %204 = vmatprep.subr.bf16.mxu0 0
    %205 = vmatpush1.bf16.msra.mxu0 %v186
    %206 = vmatprep.subr.bf16.mxu0 0
    %207 = vmatpush1.bf16.msra.mxu0 %v185
    %208 = vmatprep.subr.bf16.mxu0 0
    %209 = vmatpush1.bf16.msra.mxu0 %v184
    %210 = vmatprep.subr.bf16.mxu0 0
    %211 = vmatpush1.bf16.msra.mxu0 %v183
    %212 = vmatprep.subr.bf16.mxu0 0
    %213 = vmatpush1.bf16.msra.mxu0 %v182
    %214 = vmatprep.subr.bf16.mxu0 0
    %215 = vmatpush2.bf16.msra.mxu0 0
    %216 = vmatprep.subr.bf16.mxu0 0
    %217 = vmatpush2.bf16.msra.mxu0 0
    %218 = vmatprep.subr.bf16.mxu0 0
    %219 = vmatpush2.bf16.msra.mxu0 0
    %220 = vmatprep.subr.bf16.mxu0 0
    %221 = vmatpush2.bf16.msra.mxu0 0
    %222 = vmatprep.subr.bf16.mxu0 0
    %223 = vmatpush2.bf16.msra.mxu0 0
    %224 = vmatprep.subr.bf16.mxu0 0
    %225 = vmatpush2.bf16.msra.mxu0 0
    %226 = vmatprep.subr.bf16.mxu0 0
    %227 = vmatpush2.bf16.msra.mxu0 0
    %228 = vmatprep.subr.bf16.mxu0 0
    %229 = vmatpush2.bf16.msra.mxu0 0
    %230 = vmatprep.mubr.bf16.mxu0 0
    %231 = vmatmul.mubr.bf16.gmra.mxu0 %v143
    %v232 = vpop.f32.mrf.mxu0
    %v233 = vadd.f32 %v148, %v232
    %v234 = vpop.f32.mrf.mxu0
    %v235 = vpop.f32.mrf.mxu0
    %v236 = vpop.f32.mrf.mxu0
    %237 = vdwg.mxu0
    %vm238 = vcmp.ge.f32.partialorder %v233, 0.0
    %v239 = vmul.f32 %v233, 0.01
    %v240 = vsel %vm238, %v233, %v239
    %v241 = vld [vmem:[%s5] sm:$0xf]
    %v242 = vld [vmem:[%s5 + $0x4] sm:$0xf]
    %v243 = vld [vmem:[%s5 + $0x8] sm:$0xf]
    %v244 = vld [vmem:[%s5 + $0xc] sm:$0xf]
    %v245 = vld [vmem:[%s5 + $0x10] sm:$0xf]
    %v246 = vld [vmem:[%s5 + $0x14] sm:$0xf]
    %v247 = vld [vmem:[%s5 + $0x18] sm:$0xf]
    %v248 = vld [vmem:[%s5 + $0x1c] sm:$0xf]
    %v249 = vld [vmem:[%s5 + $0x20] sm:$0xf]
    %v250 = vld [vmem:[%s5 + $0x24] sm:$0xf]
    %v251 = vld [vmem:[%s5 + $0x28] sm:$0xf]
    %v252 = vld [vmem:[%s5 + $0x2c] sm:$0xf]
    %v253 = vld [vmem:[%s5 + $0x30] sm:$0xf]
    %v254 = vld [vmem:[%s5 + $0x34] sm:$0xf]
    %v255 = vld [vmem:[%s5 + $0x38] sm:$0xf]
    %v256 = vld [vmem:[%s5 + $0x3c] sm:$0xf]
    %v257 = vld [vmem:[%s6] sm:$0x1]
    %v258 = vpack.c.bf16 %v240, %v240
    %v260 = vlaneseq
    %v261 = vshrl.u32 %v260, 7
    %v262 = vsub.s32 0, %v261
    %v263 = vrot.slane %v257, %v262
    %v281 = vunpack.c.l.b16 %v241
    %v282 = vunpack.c.l.b16 %v242
    %v283 = vunpack.c.l.b16 %v243
    %v284 = vunpack.c.l.b16 %v244
    %v285 = vunpack.c.l.b16 %v245
    %v286 = vunpack.c.l.b16 %v246
    %v287 = vunpack.c.l.b16 %v247
    %v288 = vunpack.c.l.b16 %v248
    %v289 = vunpack.c.l.b16 %v249
    %v290 = vunpack.c.l.b16 %v250
    %v291 = vunpack.c.l.b16 %v251
    %v292 = vunpack.c.l.b16 %v252
    %v293 = vunpack.c.l.b16 %v253
    %v294 = vunpack.c.l.b16 %v254
    %v295 = vunpack.c.l.b16 %v255
    %v296 = vunpack.c.l.b16 %v256
    %v297 = vpack.c.b16 %v282, %v281
    %v298 = vpack.c.b16 %v284, %v283
    %v299 = vpack.c.b16 %v286, %v285
    %v300 = vpack.c.b16 %v288, %v287
    %v301 = vpack.c.b16 %v290, %v289
    %v302 = vpack.c.b16 %v292, %v291
    %v303 = vpack.c.b16 %v294, %v293
    %v304 = vpack.c.b16 %v296, %v295
    %313 = vmatprep.subr.bf16.mxu0 0
    %314 = vmatpush1.bf16.msra.mxu0 %v304
    %315 = vmatprep.subr.bf16.mxu0 0
    %316 = vmatpush1.bf16.msra.mxu0 %v303
    %317 = vmatprep.subr.bf16.mxu0 0
    %318 = vmatpush1.bf16.msra.mxu0 %v302
    %319 = vmatprep.subr.bf16.mxu0 0
    %320 = vmatpush1.bf16.msra.mxu0 %v301
    %321 = vmatprep.subr.bf16.mxu0 0
    %322 = vmatpush1.bf16.msra.mxu0 %v300
    %323 = vmatprep.subr.bf16.mxu0 0
    %324 = vmatpush1.bf16.msra.mxu0 %v299
    %325 = vmatprep.subr.bf16.mxu0 0
    %326 = vmatpush1.bf16.msra.mxu0 %v298
    %327 = vmatprep.subr.bf16.mxu0 0
    %328 = vmatpush1.bf16.msra.mxu0 %v297
    %329 = vmatprep.subr.bf16.mxu0 0
    %330 = vmatpush2.bf16.msra.mxu0 0
    %331 = vmatprep.subr.bf16.mxu0 0
    %332 = vmatpush2.bf16.msra.mxu0 0
    %333 = vmatprep.subr.bf16.mxu0 0
    %334 = vmatpush2.bf16.msra.mxu0 0
    %335 = vmatprep.subr.bf16.mxu0 0
    %336 = vmatpush2.bf16.msra.mxu0 0
    %337 = vmatprep.subr.bf16.mxu0 0
    %338 = vmatpush2.bf16.msra.mxu0 0
    %339 = vmatprep.subr.bf16.mxu0 0
    %340 = vmatpush2.bf16.msra.mxu0 0
    %341 = vmatprep.subr.bf16.mxu0 0
    %342 = vmatpush2.bf16.msra.mxu0 0
    %343 = vmatprep.subr.bf16.mxu0 0
    %344 = vmatpush2.bf16.msra.mxu0 0
    %345 = vmatprep.mubr.bf16.mxu0 0
    %346 = vmatmul.mubr.bf16.gmra.mxu0 %v258
    %v347 = vpop.f32.mrf.mxu0
    %v348 = vadd.f32 %v263, %v347
    %v349 = vpop.f32.mrf.mxu0
    %v350 = vpop.f32.mrf.mxu0
    %v351 = vpop.f32.mrf.mxu0
    %352 = vdwg.mxu0
    %vm353 = vcmask 130048
    %354 = vst.msk [vmem:[#allocation7] sm:$0xff] %vm353, %v348
    // Predicated region
    $region38: #{tpu_custom_call.1} parent=1 // pred_check
      _
    $region39: #{tpu_custom_call.1} parent=1 // pred_check_branch
      %356 = sbr.rel (0) target = $region41
    $region40: #{tpu_custom_call.1} parent=1 // pred_region
      %s358 = ssub.s32 128, 128
      %359 = vsyncadd [#allocation4], %s358
      %s361 = sshll.u32 [#allocation7], 4
      %s362 = int_to_ptr.vmem [resolvable:$true] %s361
      %364 = dma.vmem_to_hbm [thread:$0]  %s362, 128, %s7, [#allocation4]
    $region41: #{tpu_custom_call.1} parent=1 // pred_fallthru
      _
    // Predicated region
    $region42: #{tpu_custom_call.1} parent=1 // pred_check
      _
    $region43: #{tpu_custom_call.1} parent=1 // pred_check_branch
      %366 = sbr.rel (0) target = $region45
    $region44: #{tpu_custom_call.1} parent=1 // pred_region
      %367 = dma.done [#allocation4], 128
    $region45: #{tpu_custom_call.1} parent=1 // pred_fallthru
      _
    %368 = vsyncpa [#allocation3], 1
    %369 = vsyncpa [#allocation6], 1
    %370 = vsyncpa [#allocation4], 1

</llo_original>
